<compile_context>
chip_gen: v7x
topology: tpu7x:2x2x1
jax: 0.10.0
libtpu: 0.0.40
codegen_flags: <defaults>
</compile_context>

<pallas_src>
import functools

import jax
import jax.numpy as jnp
from jax.experimental import pallas as pl
from jax.experimental.pallas import tpu as pltpu

IN_CHANNELS = 3
OUT_CHANNELS = 64
KMAX = 7                # largest kernel size; smaller kernels are zero-padded to it
MAX_PAD = KMAX // 2     # "same" padding for the 7x7 footprint


def _fused_conv_kernel(w_ref, p_ref, o_ref, *, cout):
    """One grid step: fused multi-scale conv for a tile of `tm` output pixels.

    w_ref: (3*cout, Kp) bf16  fused (7x7-padded) weights; column K holds the biases
    p_ref: (Kp, tm)     bf16  im2col patches (K-major); row K is all 1.0 (bias row)
    o_ref: (cout, tm)   f32   sum of the three ReLU'd conv outputs (lane-dense store)
    """
    # Single 192-row MXU push; bias already comes out of the matmul via the 1.0 row.
    y = jnp.dot(w_ref[...], p_ref[...], preferred_element_type=jnp.float32)
    o_ref[...] = (jnp.maximum(y[:cout, :], 0.0)            # ReLU(conv3x3)
                  + jnp.maximum(y[cout:2 * cout, :], 0.0)   # ReLU(conv5x5)
                  + jnp.maximum(y[2 * cout:, :], 0.0))      # ReLU(conv7x7)


def _choose_m_tile(M):
    """Largest power-of-two M tile in [128, 1024] that covers M without forcing
    extra grid steps (single step for small problems; >=128 keeps stores lane-dense)."""
    tm = 1024
    while tm > 128 and tm >= 2 * M:
        tm //= 2
    return tm


def _im2col_kmajor(x_nchw):
    """(N, Cin, H, W) -> (K, M) patches built K-major directly (no big transpose).
    Row k = (dy*7 + dx)*Cin + c ; column m = n*H*W + h*W + w."""
    N, Cin, H, W = x_nchw.shape
    xp = jnp.pad(x_nchw, ((0, 0), (0, 0), (MAX_PAD, MAX_PAD), (MAX_PAD, MAX_PAD)))
    taps = [xp[:, :, dy:dy + H, dx:dx + W]                 # (N, Cin, H, W) shifted views
            for dy in range(KMAX) for dx in range(KMAX)]
    patch = jnp.stack(taps, axis=0)                        # (49, N, Cin, H, W)
    patch = jnp.transpose(patch, (0, 2, 1, 3, 4))          # (49, Cin, N, H, W): tiny-axis permute only
    return patch.reshape(KMAX * KMAX * Cin, N * H * W)     # (K, M)


def _fuse_weights_with_bias(params, k_pad):
    """Zero-pad 3x3/5x5 weights to the 7x7 footprint (exact, since input pad = 3),
    fuse along Cout, and fold the biases into column K (which multiplies the 1.0
    row of the patches).  Returns (3*Cout, k_pad) f32."""
    ws, bs = [], []
    for (w, b) in params:                                  # w: (Cout, Cin, k, k)
        k = w.shape[-1]
        p = (KMAX - k) // 2
        w7 = jnp.pad(w, ((0, 0), (0, 0), (p, p), (p, p)))  # (Cout, Cin, 7, 7)
        cout, cin = w7.shape[0], w7.shape[1]
        ws.append(jnp.transpose(w7, (0, 2, 3, 1)).reshape(cout, KMAX * KMAX * cin))
        bs.append(b)
    w_fused = jnp.concatenate(ws, axis=0)                  # (3*Cout, K)
    b_fused = jnp.concatenate(bs, axis=0)                  # (3*Cout,)
    K = w_fused.shape[1]
    w_pad = jnp.zeros((w_fused.shape[0], k_pad), jnp.float32)
    w_pad = w_pad.at[:, :K].set(w_fused).at[:, K].set(b_fused)
    return w_pad


def multi_scale_convolution(x_nchw, params):
    """x_nchw: (N, Cin, H, W) f32.  Returns (N, Cout, H, W) =
    ReLU(conv3x3) + ReLU(conv5x5) + ReLU(conv7x7), matching the PyTorch module."""
    N, Cin, H, W = x_nchw.shape
    Cout = params[0][0].shape[0]
    M = N * H * W
    K = KMAX * KMAX * Cin
    # +1 guarantees a free pad row for the folded bias; round to 16 for bf16
    # sublane-group packing (147 -> 160).
    Kp = -(-(K + 1) // 16) * 16
    tm = _choose_m_tile(M)
    Mp = -(-M // tm) * tm

    # Wrapper-side layout plumbing (tiny at this size): K-major im2col + fused weights.
    patches = _im2col_kmajor(x_nchw)                                    # (K, M) f32
    patches = jnp.pad(patches, ((0, Kp - K), (0, Mp - M)))
    patches = patches.at[K, :].set(1.0).astype(jnp.bfloat16)            # bias row = 1.0
    w_fused = _fuse_weights_with_bias(params, Kp).astype(jnp.bfloat16)  # (3*Cout, Kp)

    kernel = functools.partial(_fused_conv_kernel, cout=Cout)

    cost = pl.CostEstimate(
        flops=2 * (3 * Cout) * Kp * Mp,
        transcendentals=0,
        bytes_accessed=patches.size * 2 + w_fused.size * 2 + Cout * Mp * 4,
    )

    out_cm = pl.pallas_call(
        kernel,
        out_shape=jax.ShapeDtypeStruct((Cout, Mp), jnp.float32),
        grid_spec=pltpu.PrefetchScalarGridSpec(
            num_scalar_prefetch=0,
            grid=(Mp // tm,),
            in_specs=[
                pl.BlockSpec((3 * Cout, Kp), lambda i: (0, 0)),   # fused weights+bias (grid-invariant)
                pl.BlockSpec((Kp, tm), lambda i: (0, i)),         # patch tile: the only per-step stream
                # TODO(synk): add pipeline_mode=pl.Buffered(3) on the patch spec once
                # the grid gets long and profiling shows exposed DMA.
            ],
            out_specs=pl.BlockSpec((Cout, tm), lambda i: (0, i)), # lane-dense output tile
        ),
        compiler_params=pltpu.CompilerParams(
            dimension_semantics=("parallel",),                    # shards M across v7x's 2 TCs at scale
            vmem_limit_bytes=32 * 1024 * 1024,                    # v7x default; blocks here are << this
        ),
        cost_estimate=cost,
    )(w_fused, patches)

    # (Cout, M) -> (N, Cout, H, W): undo the channel-major flattening (XLA side).
    out = out_cm[:, :M].reshape(Cout, N, H, W)
    return jnp.transpose(out, (1, 0, 2, 3))


def init_params(key, in_channels, out_channels):
    """Deterministic init mimicking nn.Conv2d default (kaiming-uniform-ish)."""
    params = []
    for k in (3, 5, 7):
        key, kw, kb = jax.random.split(key, 3)
        fan_in = in_channels * k * k
        bound = 1.0 / jnp.sqrt(fan_in)
        w = jax.random.uniform(kw, (out_channels, in_channels, k, k),
                               jnp.float32, -bound, bound)
        b = jax.random.uniform(kb, (out_channels,), jnp.float32, -bound, bound)
        params.append((w, b))
    return params


def _reference(x_nchw, params):
    """Pure-JAX f32 reference using lax.conv_general_dilated (NCHW, like PyTorch)."""
    out = None
    for (w, b) in params:
        k = w.shape[-1]
        y = jax.lax.conv_general_dilated(
            x_nchw, w, window_strides=(1, 1),
            padding=[(k // 2, k // 2), (k // 2, k // 2)],
            dimension_numbers=("NCHW", "OIHW", "NCHW"))
        y = jax.nn.relu(y + b[None, :, None, None])
        out = y if out is None else out + y
    return out


if __name__ == "__main__":
    key = jax.random.PRNGKey(0)
    key, kx = jax.random.split(key)

    N, C, H, W = 2, IN_CHANNELS, 16, 16
    x = jax.random.normal(kx, (N, C, H, W), dtype=jnp.float32)
    params = init_params(key, IN_CHANNELS, OUT_CHANNELS)

    out = multi_scale_convolution(x, params)
    out = jax.block_until_ready(out)

    ref = _reference(x, params)
    assert out.shape == (N, OUT_CHANNELS, H, W)
    # bf16 MXU operands (f32 accumulation) -> loosened tolerance vs f32 reference.
    assert jnp.allclose(out, ref, rtol=2e-2, atol=5e-2), "mismatch vs JAX reference"

    print("KERNEL_OK")
</pallas_src>

<mosaic_0001>
module attributes {stable_mosaic.version = 11 : i64} {
  func.func @_fused_conv_kernel(%arg0: i32, %arg1: memref<192x160xbf16, #tpu.memory_space<vmem>>, %arg2: memref<160x512xbf16, #tpu.memory_space<vmem>>, %arg3: memref<64x512xf32, #tpu.memory_space<vmem>>) attributes {dimension_semantics = [#tpu.dimension_semantics<parallel>], iteration_bounds = array<i64: 1>, scalar_prefetch = 0 : i64, scratch_operands = 0 : i64, tpu.core_type = #tpu.core_type<tc>, window_params = [{pipeline_mode = #tpu.pipeline_mode<synchronous>, transform_indices = @transform_0, window_bounds = array<i64: 192, 160>}, {transform_indices = @transform_1, window_bounds = array<i64: 160, 512>}, {transform_indices = @transform_2, window_bounds = array<i64: 64, 512>}]} {
    %c0 = arith.constant 0 : index
    %c0_0 = arith.constant 0 : index
    %0 = vector.load %arg1[%c0, %c0_0] : memref<192x160xbf16, #tpu.memory_space<vmem>>, vector<192x160xbf16>
    %c0_1 = arith.constant 0 : index
    %c0_2 = arith.constant 0 : index
    %1 = vector.load %arg2[%c0_1, %c0_2] : memref<160x512xbf16, #tpu.memory_space<vmem>>, vector<160x512xbf16>
    %cst = arith.constant dense<0.000000e+00> : vector<192x512xf32>
    %2 = tpu.matmul %0, %1, %cst {dimension_numbers = #tpu.dot_dimension_numbers<[1], [0], [0], [1], [0, 0, 1, 1], [], []>} : vector<192x160xbf16>, vector<160x512xbf16>, vector<192x512xf32> -> vector<192x512xf32>
    %3 = vector.extract_strided_slice %2 {offsets = [0, 0], sizes = [64, 512], strides = [1, 1]} : vector<192x512xf32> to vector<64x512xf32>
    %cst_3 = arith.constant 0.000000e+00 : f32
    %4 = vector.broadcast %cst_3 : f32 to vector<64x512xf32>
    %5 = arith.maximumf %3, %4 : vector<64x512xf32>
    %6 = vector.extract_strided_slice %2 {offsets = [64, 0], sizes = [64, 512], strides = [1, 1]} : vector<192x512xf32> to vector<64x512xf32>
    %cst_4 = arith.constant 0.000000e+00 : f32
    %7 = vector.broadcast %cst_4 : f32 to vector<64x512xf32>
    %8 = arith.maximumf %6, %7 : vector<64x512xf32>
    %9 = arith.addf %5, %8 : vector<64x512xf32>
    %10 = vector.extract_strided_slice %2 {offsets = [128, 0], sizes = [64, 512], strides = [1, 1]} : vector<192x512xf32> to vector<64x512xf32>
    %cst_5 = arith.constant 0.000000e+00 : f32
    %11 = vector.broadcast %cst_5 : f32 to vector<64x512xf32>
    %12 = arith.maximumf %10, %11 : vector<64x512xf32>
    %13 = arith.addf %9, %12 : vector<64x512xf32>
    %c0_6 = arith.constant 0 : index
    %c0_7 = arith.constant 0 : index
    %14 = vector.load %arg3[%c0_6, %c0_7] : memref<64x512xf32, #tpu.memory_space<vmem>>, vector<64x512xf32>
    tpu.vector_store %arg3[%c0_6, %c0_7], %13 {strides = array<i32>} : memref<64x512xf32, #tpu.memory_space<vmem>>, vector<64x512xf32>,
    return
  }
  func.func @transform_0(%arg0: i32) -> (i32, i32) {
    %c0_i32 = arith.constant 0 : i32
    %c0_i32_0 = arith.constant 0 : i32
    %c0_i32_1 = arith.constant 0 : i32
    return %c0_i32, %c0_i32_0 : i32, i32
  }
  func.func @transform_1(%arg0: i32) -> (i32, i32) {
    %c0_i32 = arith.constant 0 : i32
    %c0_i32_0 = arith.constant 0 : i32
    return %c0_i32, %arg0 : i32, i32
  }
  func.func @transform_2(%arg0: i32) -> (i32, i32) {
    %c0_i32 = arith.constant 0 : i32
    %c0_i32_0 = arith.constant 0 : i32
    return %c0_i32, %arg0 : i32, i32
  }
}

</mosaic_0001>

<llo_original>
// kernel: tpu_custom_call.1
$region0: #{tpu_custom_call.1}
  #allocation0 [shape = 'u32[]', space=smem, size = 0x4, offset = 0x4, fixed_abs, tag = 'smem constant byte address 0x4 - core index']
  #allocation1 [shape = 'u32[144,128]{1,0:T(1,128)}', space=vmem, size = 0x12000, scoped, tag = 'internal scratch']
  %s0 = inlined_call_operand.vmem [shape: bf16[192,160], index: 0, kind: input, shape index: {}]
  %s1 = inlined_call_operand.vmem [shape: bf16[160,512], index: 1, kind: input, shape index: {}]
  %s2 = inlined_call_operand.hbm [shape: f32[64,512], index: 2, kind: output, shape index: {}]
  %s3 = sld [smem:[#allocation0]]
  $region18: #{tpu_custom_call.1} parent=0
    _
  %s5 = ssub.s32 1, %s3
  %s6 = scalar_select 0, %s5, %s3
  $region1: #{tpu_custom_call.1} parent=0
    #allocation2 [shape = 'u8[131072]{0}', space=vmem, size = 0x20000, scoped, tag = 'output window, operand 0, single buffered']
    #allocation3 [shape = 's32[1]{0}', space=sflag, size = 0x4, scoped, tag = 'scoped memory for tpu_custom_call.1']
    %7 = vsyncpa [#allocation3], 0
    // Predicated region
    $region2: #{tpu_custom_call.1} parent=1 // pred_check
      _
    $region3: #{tpu_custom_call.1} parent=1 // pred_check_branch
      %9 = sbr.rel (0) target = $region5
    $region4: #{tpu_custom_call.1} parent=1 // pred_region
      _
    $region5: #{tpu_custom_call.1} parent=1 // pred_fallthru
      _
    // Predicated region
    $region6: #{tpu_custom_call.1} parent=1 // pred_check
      _
    $region7: #{tpu_custom_call.1} parent=1 // pred_check_branch
      %11 = sbr.rel (0) target = $region9
    $region8: #{tpu_custom_call.1} parent=1 // pred_region
      _
    $region9: #{tpu_custom_call.1} parent=1 // pred_fallthru
      _
    %v13 = vld [vmem:[%s0] sm:$0xff]
    %v14 = vld [vmem:[%s0 + $0x8] sm:$0xff]
    %v15 = vld [vmem:[%s0 + $0x10] sm:$0xff]
    %v16 = vld [vmem:[%s0 + $0x18] sm:$0xff]
    %v17 = vld [vmem:[%s0 + $0x20] sm:$0xff]
    %v18 = vld [vmem:[%s0 + $0x28] sm:$0xff]
    %v19 = vld [vmem:[%s0 + $0x30] sm:$0xff]
    %v20 = vld [vmem:[%s0 + $0x38] sm:$0xff]
    %v21 = vld [vmem:[%s0 + $0x40] sm:$0xff]
    %v22 = vld [vmem:[%s0 + $0x48] sm:$0xff]
    %v23 = vld [vmem:[%s0 + $0x50] sm:$0xff]
    %v24 = vld [vmem:[%s0 + $0x58] sm:$0xff]
    %v25 = vld [vmem:[%s0 + $0x60] sm:$0xff]
    %v26 = vld [vmem:[%s0 + $0x68] sm:$0xff]
    %v27 = vld [vmem:[%s0 + $0x70] sm:$0xff]
    %v28 = vld [vmem:[%s0 + $0x78] sm:$0xff]
    %v29 = vld [vmem:[%s0 + $0x80] sm:$0xff]
    %v30 = vld [vmem:[%s0 + $0x88] sm:$0xff]
    %v31 = vld [vmem:[%s0 + $0x90] sm:$0xff]
    %v32 = vld [vmem:[%s0 + $0x98] sm:$0xff]
    %v33 = vld [vmem:[%s0 + $0xa0] sm:$0xff]
    %v34 = vld [vmem:[%s0 + $0xa8] sm:$0xff]
    %v35 = vld [vmem:[%s0 + $0xb0] sm:$0xff]
    %v36 = vld [vmem:[%s0 + $0xb8] sm:$0xff]
    %v37 = vld [vmem:[%s1] sm:$0xff]
    %v38 = vld [vmem:[%s1 + $0x8] sm:$0xff]
    %v39 = vld [vmem:[%s1 + $0x10] sm:$0xff]
    %v40 = vld [vmem:[%s1 + $0x18] sm:$0xff]
    %v41 = vld [vmem:[%s1 + $0x20] sm:$0xff]
    %v42 = vld [vmem:[%s1 + $0x28] sm:$0xff]
    %v43 = vld [vmem:[%s1 + $0x30] sm:$0xff]
    %v44 = vld [vmem:[%s1 + $0x38] sm:$0xff]
    %v45 = vld [vmem:[%s1 + $0x40] sm:$0xff]
    %v46 = vld [vmem:[%s1 + $0x48] sm:$0xff]
    %v47 = vld [vmem:[%s1 + $0x50] sm:$0xff]
    %v48 = vld [vmem:[%s1 + $0x58] sm:$0xff]
    %v49 = vld [vmem:[%s1 + $0x60] sm:$0xff]
    %v50 = vld [vmem:[%s1 + $0x68] sm:$0xff]
    %v51 = vld [vmem:[%s1 + $0x70] sm:$0xff]
    %v52 = vld [vmem:[%s1 + $0x78] sm:$0xff]
    %v53 = vld [vmem:[%s1 + $0x80] sm:$0xff]
    %v54 = vld [vmem:[%s1 + $0x88] sm:$0xff]
    %v55 = vld [vmem:[%s1 + $0x90] sm:$0xff]
    %v56 = vld [vmem:[%s1 + $0x98] sm:$0xff]
    %v57 = vld [vmem:[%s1 + $0xa0] sm:$0xff]
    %v58 = vld [vmem:[%s1 + $0xa8] sm:$0xff]
    %v59 = vld [vmem:[%s1 + $0xb0] sm:$0xff]
    %v60 = vld [vmem:[%s1 + $0xb8] sm:$0xff]
    %v61 = vld [vmem:[%s1 + $0xc0] sm:$0xff]
    %v62 = vld [vmem:[%s1 + $0xc8] sm:$0xff]
    %v63 = vld [vmem:[%s1 + $0xd0] sm:$0xff]
    %v64 = vld [vmem:[%s1 + $0xd8] sm:$0xff]
    %v65 = vld [vmem:[%s1 + $0xe0] sm:$0xff]
    %v66 = vld [vmem:[%s1 + $0xe8] sm:$0xff]
    %v67 = vld [vmem:[%s1 + $0xf0] sm:$0xff]
    %v68 = vld [vmem:[%s1 + $0xf8] sm:$0xff]
    %v69 = vld [vmem:[%s1 + $0x100] sm:$0xff]
    %v70 = vld [vmem:[%s1 + $0x108] sm:$0xff]
    %v71 = vld [vmem:[%s1 + $0x110] sm:$0xff]
    %v72 = vld [vmem:[%s1 + $0x118] sm:$0xff]
    %v73 = vld [vmem:[%s1 + $0x120] sm:$0xff]
    %v74 = vld [vmem:[%s1 + $0x128] sm:$0xff]
    %v75 = vld [vmem:[%s1 + $0x130] sm:$0xff]
    %v76 = vld [vmem:[%s1 + $0x138] sm:$0xff]
    %v101 = vunpack.c.l.b16 %v13
    %v102 = vunpack.c.h.b16 %v13
    %v103 = vunpack.c.l.b16 %v14
    %v104 = vunpack.c.h.b16 %v14
    %v105 = vunpack.c.l.b16 %v15
    %v106 = vunpack.c.h.b16 %v15
    %v107 = vunpack.c.l.b16 %v16
    %v108 = vunpack.c.h.b16 %v16
    %v109 = vunpack.c.l.b16 %v17
    %v110 = vunpack.c.h.b16 %v17
    %v111 = vunpack.c.l.b16 %v18
    %v112 = vunpack.c.h.b16 %v18
    %v113 = vunpack.c.l.b16 %v19
    %v114 = vunpack.c.h.b16 %v19
    %v115 = vunpack.c.l.b16 %v20
    %v116 = vunpack.c.h.b16 %v20
    %v117 = vunpack.c.l.b16 %v21
    %v118 = vunpack.c.h.b16 %v21
    %v119 = vunpack.c.l.b16 %v22
    %v120 = vunpack.c.h.b16 %v22
    %v121 = vunpack.c.l.b16 %v23
    %v122 = vunpack.c.h.b16 %v23
    %v123 = vunpack.c.l.b16 %v24
    %v124 = vunpack.c.h.b16 %v24
    %v125 = vunpack.c.l.b16 %v25
    %v126 = vunpack.c.h.b16 %v25
    %v127 = vunpack.c.l.b16 %v26
    %v128 = vunpack.c.h.b16 %v26
    %v129 = vunpack.c.l.b16 %v27
    %v130 = vunpack.c.h.b16 %v27
    %v131 = vunpack.c.l.b16 %v28
    %v132 = vunpack.c.h.b16 %v28
    %v133 = vunpack.c.l.b16 %v29
    %v134 = vunpack.c.h.b16 %v29
    %v135 = vunpack.c.l.b16 %v30
    %v136 = vunpack.c.h.b16 %v30
    %v137 = vunpack.c.l.b16 %v31
    %v138 = vunpack.c.h.b16 %v31
    %v139 = vunpack.c.l.b16 %v32
    %v140 = vunpack.c.h.b16 %v32
    %v141 = vunpack.c.l.b16 %v33
    %v142 = vunpack.c.h.b16 %v33
    %v143 = vunpack.c.l.b16 %v34
    %v144 = vunpack.c.h.b16 %v34
    %v145 = vunpack.c.l.b16 %v35
    %v146 = vunpack.c.h.b16 %v35
    %v147 = vunpack.c.l.b16 %v36
    %v148 = vunpack.c.h.b16 %v36
    %v149 = vpack.c.b16 %v103, %v101
    %v150 = vpack.c.b16 %v104, %v102
    %v151 = vpack.c.b16 %v107, %v105
    %v152 = vpack.c.b16 %v108, %v106
    %v153 = vpack.c.b16 %v111, %v109
    %v154 = vpack.c.b16 %v112, %v110
    %v155 = vpack.c.b16 %v115, %v113
    %v156 = vpack.c.b16 %v116, %v114
    %v157 = vpack.c.b16 %v119, %v117
    %v158 = vpack.c.b16 %v120, %v118
    %v159 = vpack.c.b16 %v123, %v121
    %v160 = vpack.c.b16 %v124, %v122
    %v161 = vpack.c.b16 %v127, %v125
    %v162 = vpack.c.b16 %v128, %v126
    %v163 = vpack.c.b16 %v131, %v129
    %v164 = vpack.c.b16 %v132, %v130
    %v165 = vpack.c.b16 %v135, %v133
    %v166 = vpack.c.b16 %v136, %v134
    %v167 = vpack.c.b16 %v139, %v137
    %v168 = vpack.c.b16 %v140, %v138
    %v169 = vpack.c.b16 %v143, %v141
    %v170 = vpack.c.b16 %v144, %v142
    %v171 = vpack.c.b16 %v147, %v145
    %v172 = vpack.c.b16 %v148, %v146
    %v225 = vunpack.c.l.b16 %v37
    %v226 = vunpack.c.h.b16 %v37
    %v227 = vunpack.c.l.b16 %v38
    %v228 = vunpack.c.h.b16 %v38
    %v229 = vunpack.c.l.b16 %v39
    %v230 = vunpack.c.h.b16 %v39
    %v231 = vunpack.c.l.b16 %v40
    %v232 = vunpack.c.h.b16 %v40
    %v233 = vunpack.c.l.b16 %v41
    %v234 = vunpack.c.h.b16 %v41
    %v235 = vunpack.c.l.b16 %v42
    %v236 = vunpack.c.h.b16 %v42
    %v237 = vunpack.c.l.b16 %v43
    %v238 = vunpack.c.h.b16 %v43
    %v239 = vunpack.c.l.b16 %v44
    %v240 = vunpack.c.h.b16 %v44
    %v241 = vunpack.c.l.b16 %v45
    %v242 = vunpack.c.h.b16 %v45
    %v243 = vunpack.c.l.b16 %v46
    %v244 = vunpack.c.h.b16 %v46
    %v245 = vunpack.c.l.b16 %v47
    %v246 = vunpack.c.h.b16 %v47
    %v247 = vunpack.c.l.b16 %v48
    %v248 = vunpack.c.h.b16 %v48
    %v249 = vunpack.c.l.b16 %v49
    %v250 = vunpack.c.h.b16 %v49
    %v251 = vunpack.c.l.b16 %v50
    %v252 = vunpack.c.h.b16 %v50
    %v253 = vunpack.c.l.b16 %v51
    %v254 = vunpack.c.h.b16 %v51
    %v255 = vunpack.c.l.b16 %v52
    %v256 = vunpack.c.h.b16 %v52
    %v257 = vunpack.c.l.b16 %v53
    %v258 = vunpack.c.h.b16 %v53
    %v259 = vunpack.c.l.b16 %v54
    %v260 = vunpack.c.h.b16 %v54
    %v261 = vunpack.c.l.b16 %v55
    %v262 = vunpack.c.h.b16 %v55
    %v263 = vunpack.c.l.b16 %v56
    %v264 = vunpack.c.h.b16 %v56
    %v265 = vunpack.c.l.b16 %v57
    %v266 = vunpack.c.h.b16 %v57
    %v267 = vunpack.c.l.b16 %v58
    %v268 = vunpack.c.h.b16 %v58
    %v269 = vunpack.c.l.b16 %v59
    %v270 = vunpack.c.h.b16 %v59
    %v271 = vunpack.c.l.b16 %v60
    %v272 = vunpack.c.h.b16 %v60
    %v273 = vunpack.c.l.b16 %v61
    %v274 = vunpack.c.h.b16 %v61
    %v275 = vunpack.c.l.b16 %v62
    %v276 = vunpack.c.h.b16 %v62
    %v277 = vunpack.c.l.b16 %v63
    %v278 = vunpack.c.h.b16 %v63
    %v279 = vunpack.c.l.b16 %v64
    %v280 = vunpack.c.h.b16 %v64
    %v281 = vunpack.c.l.b16 %v65
    %v282 = vunpack.c.h.b16 %v65
    %v283 = vunpack.c.l.b16 %v66
    %v284 = vunpack.c.h.b16 %v66
    %v285 = vunpack.c.l.b16 %v67
    %v286 = vunpack.c.h.b16 %v67
    %v287 = vunpack.c.l.b16 %v68
    %v288 = vunpack.c.h.b16 %v68
    %v289 = vunpack.c.l.b16 %v69
    %v290 = vunpack.c.h.b16 %v69
    %v291 = vunpack.c.l.b16 %v70
    %v292 = vunpack.c.h.b16 %v70
    %v293 = vunpack.c.l.b16 %v71
    %v294 = vunpack.c.h.b16 %v71
    %v295 = vunpack.c.l.b16 %v72
    %v296 = vunpack.c.h.b16 %v72
    %v297 = vunpack.c.l.b16 %v73
    %v298 = vunpack.c.h.b16 %v73
    %v299 = vunpack.c.l.b16 %v74
    %v300 = vunpack.c.h.b16 %v74
    %v301 = vunpack.c.l.b16 %v75
    %v302 = vunpack.c.h.b16 %v75
    %v303 = vunpack.c.l.b16 %v76
    %v304 = vunpack.c.h.b16 %v76
    %v305 = vpack.c.b16 %v229, %v225
    %v306 = vpack.c.b16 %v230, %v226
    %v307 = vpack.c.b16 %v231, %v227
    %v308 = vpack.c.b16 %v232, %v228
    %v309 = vpack.c.b16 %v237, %v233
    %v310 = vpack.c.b16 %v238, %v234
    %v311 = vpack.c.b16 %v239, %v235
    %v312 = vpack.c.b16 %v240, %v236
    %v313 = vpack.c.b16 %v245, %v241
    %v314 = vpack.c.b16 %v246, %v242
    %v315 = vpack.c.b16 %v247, %v243
    %v316 = vpack.c.b16 %v248, %v244
    %v317 = vpack.c.b16 %v253, %v249
    %v318 = vpack.c.b16 %v254, %v250
    %v319 = vpack.c.b16 %v255, %v251
    %v320 = vpack.c.b16 %v256, %v252
    %v321 = vpack.c.b16 %v261, %v257
    %v322 = vpack.c.b16 %v262, %v258
    %v323 = vpack.c.b16 %v263, %v259
    %v324 = vpack.c.b16 %v264, %v260
    %v325 = vpack.c.b16 %v269, %v265
    %v326 = vpack.c.b16 %v270, %v266
    %v327 = vpack.c.b16 %v271, %v267
    %v328 = vpack.c.b16 %v272, %v268
    %v329 = vpack.c.b16 %v277, %v273
    %v330 = vpack.c.b16 %v278, %v274
    %v331 = vpack.c.b16 %v279, %v275
    %v332 = vpack.c.b16 %v280, %v276
    %v333 = vpack.c.b16 %v285, %v281
    %v334 = vpack.c.b16 %v286, %v282
    %v335 = vpack.c.b16 %v287, %v283
    %v336 = vpack.c.b16 %v288, %v284
    %v337 = vpack.c.b16 %v293, %v289
    %v338 = vpack.c.b16 %v294, %v290
    %v339 = vpack.c.b16 %v295, %v291
    %v340 = vpack.c.b16 %v296, %v292
    %v341 = vpack.c.b16 %v301, %v297
    %v342 = vpack.c.b16 %v302, %v298
    %v343 = vpack.c.b16 %v303, %v299
    %v344 = vpack.c.b16 %v304, %v300
    %vm385 = vcmask 261120
    %v387 = vsel %vm385, %v150, 0
    %v390 = vsel %vm385, %v152, 0
    %v393 = vsel %vm385, %v154, 0
    %v396 = vsel %vm385, %v156, 0
    %v399 = vsel %vm385, %v158, 0
    %v402 = vsel %vm385, %v160, 0
    %v405 = vsel %vm385, %v162, 0
    %v408 = vsel %vm385, %v164, 0
    %v411 = vsel %vm385, %v166, 0
    %v414 = vsel %vm385, %v168, 0
    %v417 = vsel %vm385, %v170, 0
    %v420 = vsel %vm385, %v172, 0
    %422 = vmatprep.subr.bf16.mxu0 %v306
    %423 = vmatpush1.bf16.msra.mxu0 %v305
    %424 = vmatprep.subr.bf16.mxu0 %v310
    %425 = vmatpush1.bf16.msra.mxu0 %v309
    %426 = vmatprep.subr.bf16.mxu0 %v314
    %427 = vmatpush1.bf16.msra.mxu0 %v313
    %428 = vmatprep.subr.bf16.mxu0 %v318
    %429 = vmatpush1.bf16.msra.mxu0 %v317
    %430 = vmatprep.subr.bf16.mxu0 %v322
    %431 = vmatpush1.bf16.msra.mxu0 %v321
    %432 = vmatprep.subr.bf16.mxu0 %v326
    %433 = vmatpush1.bf16.msra.mxu0 %v325
    %434 = vmatprep.subr.bf16.mxu0 %v330
    %435 = vmatpush1.bf16.msra.mxu0 %v329
    %436 = vmatprep.subr.bf16.mxu0 %v334
    %437 = vmatpush1.bf16.msra.mxu0 %v333
    %438 = vmatprep.subr.bf16.mxu0 %v338
    %439 = vmatpush1.bf16.msra.mxu0 %v337
    %440 = vmatprep.subr.bf16.mxu0 %v342
    %441 = vmatpush1.bf16.msra.mxu0 %v341
    %442 = vmatprep.subr.bf16.mxu0 0
    %443 = vmatpush1.bf16.msra.mxu0 0
    %444 = vmatprep.subr.bf16.mxu0 0
    %445 = vmatpush1.bf16.msra.mxu0 0
    %446 = vmatprep.subr.bf16.mxu0 0
    %447 = vmatpush1.bf16.msra.mxu0 0
    %448 = vmatprep.subr.bf16.mxu0 0
    %449 = vmatpush1.bf16.msra.mxu0 0
    %450 = vmatprep.subr.bf16.mxu0 0
    %451 = vmatpush1.bf16.msra.mxu0 0
    %452 = vmatprep.subr.bf16.mxu0 0
    %453 = vmatpush1.bf16.msra.mxu0 0
    %454 = vmatprep.mubr.bf16.mxu0 %v387
    %455 = vmatmul.mubr.bf16.gmra.mrb[0].mxu0 %v149
    %v456 = vpop.f32.mrb[0].mxu0
    %v457 = vadd.f32 0.0, %v456
    %v458 = vpop.f32.mrb[0].mxu0
    %v459 = vadd.f32 0.0, %v458
    %v460 = vpop.f32.mrb[0].mxu0
    %v461 = vadd.f32 0.0, %v460
    %v462 = vpop.f32.mrb[0].mxu0
    %v463 = vadd.f32 0.0, %v462
    %464 = vmatprep.mubr.bf16.mxu0 %v390
    %465 = vmatmul.mubr.bf16.gmra.mrb[0].mxu0 %v151
    %v466 = vpop.f32.mrb[0].mxu0
    %v467 = vadd.f32 0.0, %v466
    %v468 = vpop.f32.mrb[0].mxu0
    %v469 = vadd.f32 0.0, %v468
    %v470 = vpop.f32.mrb[0].mxu0
    %v471 = vadd.f32 0.0, %v470
    %v472 = vpop.f32.mrb[0].mxu0
    %v473 = vadd.f32 0.0, %v472
    %474 = vmatprep.mubr.bf16.mxu0 %v393
    %475 = vmatmul.mubr.bf16.gmra.mrb[0].mxu0 %v153
    %v476 = vpop.f32.mrb[0].mxu0
    %v477 = vadd.f32 0.0, %v476
    %v478 = vpop.f32.mrb[0].mxu0
    %v479 = vadd.f32 0.0, %v478
    %v480 = vpop.f32.mrb[0].mxu0
    %v481 = vadd.f32 0.0, %v480
    %v482 = vpop.f32.mrb[0].mxu0
    %v483 = vadd.f32 0.0, %v482
    %484 = vmatprep.mubr.bf16.mxu0 %v396
    %485 = vmatmul.mubr.bf16.gmra.mrb[0].mxu0 %v155
    %v486 = vpop.f32.mrb[0].mxu0
    %v487 = vadd.f32 0.0, %v486
    %v488 = vpop.f32.mrb[0].mxu0
    %v489 = vadd.f32 0.0, %v488
    %v490 = vpop.f32.mrb[0].mxu0
    %v491 = vadd.f32 0.0, %v490
    %v492 = vpop.f32.mrb[0].mxu0
    %v493 = vadd.f32 0.0, %v492
    %494 = vmatprep.mubr.bf16.mxu0 %v399
    %495 = vmatmul.mubr.bf16.gmra.mrb[0].mxu0 %v157
    %v496 = vpop.f32.mrb[0].mxu0
    %v497 = vadd.f32 0.0, %v496
    %v498 = vpop.f32.mrb[0].mxu0
    %v499 = vadd.f32 0.0, %v498
    %v500 = vpop.f32.mrb[0].mxu0
    %v501 = vadd.f32 0.0, %v500
    %v502 = vpop.f32.mrb[0].mxu0
    %v503 = vadd.f32 0.0, %v502
    %504 = vmatprep.mubr.bf16.mxu0 %v402
    %505 = vmatmul.mubr.bf16.gmra.mrb[0].mxu0 %v159
    %v506 = vpop.f32.mrb[0].mxu0
    %v507 = vadd.f32 0.0, %v506
    %v508 = vpop.f32.mrb[0].mxu0
    %v509 = vadd.f32 0.0, %v508
    %v510 = vpop.f32.mrb[0].mxu0
    %v511 = vadd.f32 0.0, %v510
    %v512 = vpop.f32.mrb[0].mxu0
    %v513 = vadd.f32 0.0, %v512
    %514 = vmatprep.mubr.bf16.mxu0 %v405
    %515 = vmatmul.mubr.bf16.gmra.mrb[0].mxu0 %v161
    %v516 = vpop.f32.mrb[0].mxu0
    %v517 = vadd.f32 0.0, %v516
    %v518 = vpop.f32.mrb[0].mxu0
    %v519 = vadd.f32 0.0, %v518
    %v520 = vpop.f32.mrb[0].mxu0
    %v521 = vadd.f32 0.0, %v520
    %v522 = vpop.f32.mrb[0].mxu0
    %v523 = vadd.f32 0.0, %v522
    %524 = vmatprep.mubr.bf16.mxu0 %v408
    %525 = vmatmul.mubr.bf16.gmra.mrb[0].mxu0 %v163
    %v526 = vpop.f32.mrb[0].mxu0
    %v527 = vadd.f32 0.0, %v526
    %v528 = vpop.f32.mrb[0].mxu0
    %v529 = vadd.f32 0.0, %v528
    %v530 = vpop.f32.mrb[0].mxu0
    %v531 = vadd.f32 0.0, %v530
    %v532 = vpop.f32.mrb[0].mxu0
    %v533 = vadd.f32 0.0, %v532
    %534 = vmatprep.mubr.bf16.mxu0 %v411
    %535 = vmatmul.mubr.bf16.gmra.mrb[0].mxu0 %v165
    %v536 = vpop.f32.mrb[0].mxu0
    %v537 = vadd.f32 0.0, %v536
    %v538 = vpop.f32.mrb[0].mxu0
    %v539 = vadd.f32 0.0, %v538
    %v540 = vpop.f32.mrb[0].mxu0
    %v541 = vadd.f32 0.0, %v540
    %v542 = vpop.f32.mrb[0].mxu0
    %v543 = vadd.f32 0.0, %v542
    %544 = vmatprep.mubr.bf16.mxu0 %v414
    %545 = vmatmul.mubr.bf16.gmra.mrb[0].mxu0 %v167
    %v546 = vpop.f32.mrb[0].mxu0
    %v547 = vadd.f32 0.0, %v546
    %v548 = vpop.f32.mrb[0].mxu0
    %v549 = vadd.f32 0.0, %v548
    %v550 = vpop.f32.mrb[0].mxu0
    %v551 = vadd.f32 0.0, %v550
    %v552 = vpop.f32.mrb[0].mxu0
    %v553 = vadd.f32 0.0, %v552
    %554 = vmatprep.mubr.bf16.mxu0 %v417
    %555 = vmatmul.mubr.bf16.gmra.mrb[0].mxu0 %v169
    %v556 = vpop.f32.mrb[0].mxu0
    %v557 = vadd.f32 0.0, %v556
    %v558 = vpop.f32.mrb[0].mxu0
    %v559 = vadd.f32 0.0, %v558
    %v560 = vpop.f32.mrb[0].mxu0
    %v561 = vadd.f32 0.0, %v560
    %v562 = vpop.f32.mrb[0].mxu0
    %v563 = vadd.f32 0.0, %v562
    %564 = vmatprep.mubr.bf16.mxu0 %v420
    %565 = vmatmul.mubr.bf16.gmra.mrb[0].mxu0 %v171
    %v566 = vpop.f32.mrb[0].mxu0
    %v567 = vadd.f32 0.0, %v566
    %v568 = vpop.f32.mrb[0].mxu0
    %v569 = vadd.f32 0.0, %v568
    %v570 = vpop.f32.mrb[0].mxu0
    %v571 = vadd.f32 0.0, %v570
    %v572 = vpop.f32.mrb[0].mxu0
    %v573 = vadd.f32 0.0, %v572
    %574 = vdwg.mxu0
    %575 = vmatprep.subr.bf16.mxu0 %v308
    %576 = vmatpush1.bf16.msra.mxu0 %v307
    %577 = vmatprep.subr.bf16.mxu0 %v312
    %578 = vmatpush1.bf16.msra.mxu0 %v311
    %579 = vmatprep.subr.bf16.mxu0 %v316
    %580 = vmatpush1.bf16.msra.mxu0 %v315
    %581 = vmatprep.subr.bf16.mxu0 %v320
    %582 = vmatpush1.bf16.msra.mxu0 %v319
    %583 = vmatprep.subr.bf16.mxu0 %v324
    %584 = vmatpush1.bf16.msra.mxu0 %v323
    %585 = vmatprep.subr.bf16.mxu0 %v328
    %586 = vmatpush1.bf16.msra.mxu0 %v327
    %587 = vmatprep.subr.bf16.mxu0 %v332
    %588 = vmatpush1.bf16.msra.mxu0 %v331
    %589 = vmatprep.subr.bf16.mxu0 %v336
    %590 = vmatpush1.bf16.msra.mxu0 %v335
    %591 = vmatprep.subr.bf16.mxu0 %v340
    %592 = vmatpush1.bf16.msra.mxu0 %v339
    %593 = vmatprep.subr.bf16.mxu0 %v344
    %594 = vmatpush1.bf16.msra.mxu0 %v343
    %595 = vmatprep.subr.bf16.mxu0 0
    %596 = vmatpush1.bf16.msra.mxu0 0
    %597 = vmatprep.subr.bf16.mxu0 0
    %598 = vmatpush1.bf16.msra.mxu0 0
    %599 = vmatprep.subr.bf16.mxu0 0
    %600 = vmatpush1.bf16.msra.mxu0 0
    %601 = vmatprep.subr.bf16.mxu0 0
    %602 = vmatpush1.bf16.msra.mxu0 0
    %603 = vmatprep.subr.bf16.mxu0 0
    %604 = vmatpush1.bf16.msra.mxu0 0
    %605 = vmatprep.subr.bf16.mxu0 0
    %606 = vmatpush1.bf16.msra.mxu0 0
    %607 = vmatprep.mubr.bf16.mxu0 %v387
    %608 = vmatmul.mubr.bf16.gmra.mrb[0].mxu0 %v149
    %v609 = vpop.f32.mrb[0].mxu0
    %v610 = vadd.f32 0.0, %v609
    %v611 = vpop.f32.mrb[0].mxu0
    %v612 = vadd.f32 0.0, %v611
    %v613 = vpop.f32.mrb[0].mxu0
    %v614 = vadd.f32 0.0, %v613
    %v615 = vpop.f32.mrb[0].mxu0
    %v616 = vadd.f32 0.0, %v615
    %617 = vmatprep.mubr.bf16.mxu0 %v390
    %618 = vmatmul.mubr.bf16.gmra.mrb[0].mxu0 %v151
    %v619 = vpop.f32.mrb[0].mxu0
    %v620 = vadd.f32 0.0, %v619
    %v621 = vpop.f32.mrb[0].mxu0
    %v622 = vadd.f32 0.0, %v621
    %v623 = vpop.f32.mrb[0].mxu0
    %v624 = vadd.f32 0.0, %v623
    %v625 = vpop.f32.mrb[0].mxu0
    %v626 = vadd.f32 0.0, %v625
    %627 = vmatprep.mubr.bf16.mxu0 %v393
    %628 = vmatmul.mubr.bf16.gmra.mrb[0].mxu0 %v153
    %v629 = vpop.f32.mrb[0].mxu0
    %v630 = vadd.f32 0.0, %v629
    %v631 = vpop.f32.mrb[0].mxu0
    %v632 = vadd.f32 0.0, %v631
    %v633 = vpop.f32.mrb[0].mxu0
    %v634 = vadd.f32 0.0, %v633
    %v635 = vpop.f32.mrb[0].mxu0
    %v636 = vadd.f32 0.0, %v635
    %637 = vmatprep.mubr.bf16.mxu0 %v396
    %638 = vmatmul.mubr.bf16.gmra.mrb[0].mxu0 %v155
    %v639 = vpop.f32.mrb[0].mxu0
    %v640 = vadd.f32 0.0, %v639
    %v641 = vpop.f32.mrb[0].mxu0
    %v642 = vadd.f32 0.0, %v641
    %v643 = vpop.f32.mrb[0].mxu0
    %v644 = vadd.f32 0.0, %v643
    %v645 = vpop.f32.mrb[0].mxu0
    %v646 = vadd.f32 0.0, %v645
    %647 = vmatprep.mubr.bf16.mxu0 %v399
    %648 = vmatmul.mubr.bf16.gmra.mrb[0].mxu0 %v157
    %v649 = vpop.f32.mrb[0].mxu0
    %v650 = vadd.f32 0.0, %v649
    %v651 = vpop.f32.mrb[0].mxu0
    %v652 = vadd.f32 0.0, %v651
    %v653 = vpop.f32.mrb[0].mxu0
    %v654 = vadd.f32 0.0, %v653
    %v655 = vpop.f32.mrb[0].mxu0
    %v656 = vadd.f32 0.0, %v655
    %657 = vmatprep.mubr.bf16.mxu0 %v402
    %658 = vmatmul.mubr.bf16.gmra.mrb[0].mxu0 %v159
    %v659 = vpop.f32.mrb[0].mxu0
    %v660 = vadd.f32 0.0, %v659
    %v661 = vpop.f32.mrb[0].mxu0
    %v662 = vadd.f32 0.0, %v661
    %v663 = vpop.f32.mrb[0].mxu0
    %v664 = vadd.f32 0.0, %v663
    %v665 = vpop.f32.mrb[0].mxu0
    %v666 = vadd.f32 0.0, %v665
    %667 = vmatprep.mubr.bf16.mxu0 %v405
    %668 = vmatmul.mubr.bf16.gmra.mrb[0].mxu0 %v161
    %v669 = vpop.f32.mrb[0].mxu0
    %v670 = vadd.f32 0.0, %v669
    %v671 = vpop.f32.mrb[0].mxu0
    %v672 = vadd.f32 0.0, %v671
    %v673 = vpop.f32.mrb[0].mxu0
    %v674 = vadd.f32 0.0, %v673
    %v675 = vpop.f32.mrb[0].mxu0
    %v676 = vadd.f32 0.0, %v675
    %677 = vmatprep.mubr.bf16.mxu0 %v408
    %678 = vmatmul.mubr.bf16.gmra.mrb[0].mxu0 %v163
    %v679 = vpop.f32.mrb[0].mxu0
    %v680 = vadd.f32 0.0, %v679
    %v681 = vpop.f32.mrb[0].mxu0
    %v682 = vadd.f32 0.0, %v681
    %v683 = vpop.f32.mrb[0].mxu0
    %v684 = vadd.f32 0.0, %v683
    %v685 = vpop.f32.mrb[0].mxu0
    %v686 = vadd.f32 0.0, %v685
    %687 = vmatprep.mubr.bf16.mxu0 %v411
    %688 = vmatmul.mubr.bf16.gmra.mrb[0].mxu0 %v165
    %v689 = vpop.f32.mrb[0].mxu0
    %v690 = vadd.f32 0.0, %v689
    %v691 = vpop.f32.mrb[0].mxu0
    %v692 = vadd.f32 0.0, %v691
    %v693 = vpop.f32.mrb[0].mxu0
    %v694 = vadd.f32 0.0, %v693
    %v695 = vpop.f32.mrb[0].mxu0
    %v696 = vadd.f32 0.0, %v695
    %697 = vmatprep.mubr.bf16.mxu0 %v414
    %698 = vmatmul.mubr.bf16.gmra.mrb[0].mxu0 %v167
    %v699 = vpop.f32.mrb[0].mxu0
    %v700 = vadd.f32 0.0, %v699
    %v701 = vpop.f32.mrb[0].mxu0
    %v702 = vadd.f32 0.0, %v701
    %v703 = vpop.f32.mrb[0].mxu0
    %v704 = vadd.f32 0.0, %v703
    %v705 = vpop.f32.mrb[0].mxu0
    %v706 = vadd.f32 0.0, %v705
    %707 = vmatprep.mubr.bf16.mxu0 %v417
    %708 = vmatmul.mubr.bf16.gmra.mrb[0].mxu0 %v169
    %v709 = vpop.f32.mrb[0].mxu0
    %v710 = vadd.f32 0.0, %v709
    %v711 = vpop.f32.mrb[0].mxu0
    %v712 = vadd.f32 0.0, %v711
    %v713 = vpop.f32.mrb[0].mxu0
    %v714 = vadd.f32 0.0, %v713
    %v715 = vpop.f32.mrb[0].mxu0
    %v716 = vadd.f32 0.0, %v715
    %717 = vmatprep.mubr.bf16.mxu0 %v420
    %718 = vmatmul.mubr.bf16.gmra.mrb[0].mxu0 %v171
    %v719 = vpop.f32.mrb[0].mxu0
    %v720 = vadd.f32 0.0, %v719
    %v721 = vpop.f32.mrb[0].mxu0
    %v722 = vadd.f32 0.0, %v721
    %v723 = vpop.f32.mrb[0].mxu0
    %v724 = vadd.f32 0.0, %v723
    %v725 = vpop.f32.mrb[0].mxu0
    %v726 = vadd.f32 0.0, %v725
    %727 = vdwg.mxu0
    %v728 = vmax.f32 %v457, 0.0
    %v729 = vmax.f32 %v459, 0.0
    %v730 = vmax.f32 %v610, 0.0
    %v731 = vmax.f32 %v612, 0.0
    %v732 = vmax.f32 %v461, 0.0
    %v733 = vmax.f32 %v463, 0.0
    %v734 = vmax.f32 %v614, 0.0
    %v735 = vmax.f32 %v616, 0.0
    %v736 = vmax.f32 %v467, 0.0
    %v737 = vmax.f32 %v469, 0.0
    %v738 = vmax.f32 %v620, 0.0
    %v739 = vmax.f32 %v622, 0.0
    %v740 = vmax.f32 %v471, 0.0
    %v741 = vmax.f32 %v473, 0.0
    %v742 = vmax.f32 %v624, 0.0
    %v743 = vmax.f32 %v626, 0.0
    %v744 = vmax.f32 %v477, 0.0
    %v745 = vmax.f32 %v479, 0.0
    %v746 = vmax.f32 %v630, 0.0
    %v747 = vmax.f32 %v632, 0.0
    %v748 = vmax.f32 %v481, 0.0
    %v749 = vmax.f32 %v483, 0.0
    %v750 = vmax.f32 %v634, 0.0
    %v751 = vmax.f32 %v636, 0.0
    %v752 = vmax.f32 %v487, 0.0
    %v753 = vmax.f32 %v489, 0.0
    %v754 = vmax.f32 %v640, 0.0
    %v755 = vmax.f32 %v642, 0.0
    %v756 = vmax.f32 %v491, 0.0
    %v757 = vmax.f32 %v493, 0.0
    %v758 = vmax.f32 %v644, 0.0
    %v759 = vmax.f32 %v646, 0.0
    %v760 = vmax.f32 %v497, 0.0
    %v761 = vmax.f32 %v499, 0.0
    %v762 = vmax.f32 %v650, 0.0
    %v763 = vmax.f32 %v652, 0.0
    %v764 = vmax.f32 %v501, 0.0
    %v765 = vmax.f32 %v503, 0.0
    %v766 = vmax.f32 %v654, 0.0
    %v767 = vmax.f32 %v656, 0.0
    %v768 = vmax.f32 %v507, 0.0
    %v769 = vmax.f32 %v509, 0.0
    %v770 = vmax.f32 %v660, 0.0
    %v771 = vmax.f32 %v662, 0.0
    %v772 = vmax.f32 %v511, 0.0
    %v773 = vmax.f32 %v513, 0.0
    %v774 = vmax.f32 %v664, 0.0
    %v775 = vmax.f32 %v666, 0.0
    %v776 = vmax.f32 %v517, 0.0
    %v777 = vmax.f32 %v519, 0.0
    %v778 = vmax.f32 %v670, 0.0
    %v779 = vmax.f32 %v672, 0.0
    %v780 = vmax.f32 %v521, 0.0
    %v781 = vmax.f32 %v523, 0.0
    %v782 = vmax.f32 %v674, 0.0
    %v783 = vmax.f32 %v676, 0.0
    %v784 = vmax.f32 %v527, 0.0
    %v785 = vmax.f32 %v529, 0.0
    %v786 = vmax.f32 %v680, 0.0
    %v787 = vmax.f32 %v682, 0.0
    %v788 = vmax.f32 %v531, 0.0
    %v789 = vmax.f32 %v533, 0.0
    %v790 = vmax.f32 %v684, 0.0
    %v791 = vmax.f32 %v686, 0.0
    %v792 = vadd.f32 %v728, %v760
    %v793 = vadd.f32 %v729, %v761
    %v794 = vadd.f32 %v730, %v762
    %v795 = vadd.f32 %v731, %v763
    %v796 = vadd.f32 %v732, %v764
    %v797 = vadd.f32 %v733, %v765
    %v798 = vadd.f32 %v734, %v766
    %v799 = vadd.f32 %v735, %v767
    %v800 = vadd.f32 %v736, %v768
    %v801 = vadd.f32 %v737, %v769
    %v802 = vadd.f32 %v738, %v770
    %v803 = vadd.f32 %v739, %v771
    %v804 = vadd.f32 %v740, %v772
    %v805 = vadd.f32 %v741, %v773
    %v806 = vadd.f32 %v742, %v774
    %v807 = vadd.f32 %v743, %v775
    %v808 = vadd.f32 %v744, %v776
    %v809 = vadd.f32 %v745, %v777
    %v810 = vadd.f32 %v746, %v778
    %v811 = vadd.f32 %v747, %v779
    %v812 = vadd.f32 %v748, %v780
    %v813 = vadd.f32 %v749, %v781
    %v814 = vadd.f32 %v750, %v782
    %v815 = vadd.f32 %v751, %v783
    %v816 = vadd.f32 %v752, %v784
    %v817 = vadd.f32 %v753, %v785
    %v818 = vadd.f32 %v754, %v786
    %v819 = vadd.f32 %v755, %v787
    %v820 = vadd.f32 %v756, %v788
    %v821 = vadd.f32 %v757, %v789
    %v822 = vadd.f32 %v758, %v790
    %v823 = vadd.f32 %v759, %v791
    %v824 = vmax.f32 %v537, 0.0
    %v825 = vmax.f32 %v539, 0.0
    %v826 = vmax.f32 %v690, 0.0
    %v827 = vmax.f32 %v692, 0.0
    %v828 = vmax.f32 %v541, 0.0
    %v829 = vmax.f32 %v543, 0.0
    %v830 = vmax.f32 %v694, 0.0
    %v831 = vmax.f32 %v696, 0.0
    %v832 = vmax.f32 %v547, 0.0
    %v833 = vmax.f32 %v549, 0.0
    %v834 = vmax.f32 %v700, 0.0
    %v835 = vmax.f32 %v702, 0.0
    %v836 = vmax.f32 %v551, 0.0
    %v837 = vmax.f32 %v553, 0.0
    %v838 = vmax.f32 %v704, 0.0
    %v839 = vmax.f32 %v706, 0.0
    %v840 = vmax.f32 %v557, 0.0
    %v841 = vmax.f32 %v559, 0.0
    %v842 = vmax.f32 %v710, 0.0
    %v843 = vmax.f32 %v712, 0.0
    %v844 = vmax.f32 %v561, 0.0
    %v845 = vmax.f32 %v563, 0.0
    %v846 = vmax.f32 %v714, 0.0
    %v847 = vmax.f32 %v716, 0.0
    %v848 = vmax.f32 %v567, 0.0
    %v849 = vmax.f32 %v569, 0.0
    %v850 = vmax.f32 %v720, 0.0
    %v851 = vmax.f32 %v722, 0.0
    %v852 = vmax.f32 %v571, 0.0
    %v853 = vmax.f32 %v573, 0.0
    %v854 = vmax.f32 %v724, 0.0
    %v855 = vmax.f32 %v726, 0.0
    %v856 = vadd.f32 %v792, %v824
    %v857 = vadd.f32 %v793, %v825
    %v858 = vadd.f32 %v794, %v826
    %v859 = vadd.f32 %v795, %v827
    %v860 = vadd.f32 %v796, %v828
    %v861 = vadd.f32 %v797, %v829
    %v862 = vadd.f32 %v798, %v830
    %v863 = vadd.f32 %v799, %v831
    %v864 = vadd.f32 %v800, %v832
    %v865 = vadd.f32 %v801, %v833
    %v866 = vadd.f32 %v802, %v834
    %v867 = vadd.f32 %v803, %v835
    %v868 = vadd.f32 %v804, %v836
    %v869 = vadd.f32 %v805, %v837
    %v870 = vadd.f32 %v806, %v838
    %v871 = vadd.f32 %v807, %v839
    %v872 = vadd.f32 %v808, %v840
    %v873 = vadd.f32 %v809, %v841
    %v874 = vadd.f32 %v810, %v842
    %v875 = vadd.f32 %v811, %v843
    %v876 = vadd.f32 %v812, %v844
    %v877 = vadd.f32 %v813, %v845
    %v878 = vadd.f32 %v814, %v846
    %v879 = vadd.f32 %v815, %v847
    %v880 = vadd.f32 %v816, %v848
    %v881 = vadd.f32 %v817, %v849
    %v882 = vadd.f32 %v818, %v850
    %v883 = vadd.f32 %v819, %v851
    %v884 = vadd.f32 %v820, %v852
    %v885 = vadd.f32 %v821, %v853
    %v886 = vadd.f32 %v822, %v854
    %v887 = vadd.f32 %v823, %v855
    %888 = vst [vmem:[#allocation2] sm:$0xff] %v856
    %889 = vst [vmem:[#allocation2 + $0x8] sm:$0xff] %v857
    %890 = vst [vmem:[#allocation2 + $0x10] sm:$0xff] %v858
    %891 = vst [vmem:[#allocation2 + $0x18] sm:$0xff] %v859
    %892 = vst [vmem:[#allocation2 + $0x20] sm:$0xff] %v860
    %893 = vst [vmem:[#allocation2 + $0x28] sm:$0xff] %v861
    %894 = vst [vmem:[#allocation2 + $0x30] sm:$0xff] %v862
    %895 = vst [vmem:[#allocation2 + $0x38] sm:$0xff] %v863
    %896 = vst [vmem:[#allocation2 + $0x40] sm:$0xff] %v864
    %897 = vst [vmem:[#allocation2 + $0x48] sm:$0xff] %v865
    %898 = vst [vmem:[#allocation2 + $0x50] sm:$0xff] %v866
    %899 = vst [vmem:[#allocation2 + $0x58] sm:$0xff] %v867
    %900 = vst [vmem:[#allocation2 + $0x60] sm:$0xff] %v868
    %901 = vst [vmem:[#allocation2 + $0x68] sm:$0xff] %v869
    %902 = vst [vmem:[#allocation2 + $0x70] sm:$0xff] %v870
    %903 = vst [vmem:[#allocation2 + $0x78] sm:$0xff] %v871
    %904 = vst [vmem:[#allocation2 + $0x80] sm:$0xff] %v872
    %905 = vst [vmem:[#allocation2 + $0x88] sm:$0xff] %v873
    %906 = vst [vmem:[#allocation2 + $0x90] sm:$0xff] %v874
    %907 = vst [vmem:[#allocation2 + $0x98] sm:$0xff] %v875
    %908 = vst [vmem:[#allocation2 + $0xa0] sm:$0xff] %v876
    %909 = vst [vmem:[#allocation2 + $0xa8] sm:$0xff] %v877
    %910 = vst [vmem:[#allocation2 + $0xb0] sm:$0xff] %v878
    %911 = vst [vmem:[#allocation2 + $0xb8] sm:$0xff] %v879
    %912 = vst [vmem:[#allocation2 + $0xc0] sm:$0xff] %v880
    %913 = vst [vmem:[#allocation2 + $0xc8] sm:$0xff] %v881
    %914 = vst [vmem:[#allocation2 + $0xd0] sm:$0xff] %v882
    %915 = vst [vmem:[#allocation2 + $0xd8] sm:$0xff] %v883
    %916 = vst [vmem:[#allocation2 + $0xe0] sm:$0xff] %v884
    %917 = vst [vmem:[#allocation2 + $0xe8] sm:$0xff] %v885
    %918 = vst [vmem:[#allocation2 + $0xf0] sm:$0xff] %v886
    %919 = vst [vmem:[#allocation2 + $0xf8] sm:$0xff] %v887
    // Predicated region
    $region10: #{tpu_custom_call.1} parent=1 // pred_check
      _
    $region11: #{tpu_custom_call.1} parent=1 // pred_check_branch
      %921 = sbr.rel (0) target = $region13
    $region12: #{tpu_custom_call.1} parent=1 // pred_region
      %s923 = ssub.s32 4096, 4096
      %924 = vsyncadd [#allocation3], %s923
      %s925 = sshll.u32 [#allocation2], 4
      %s926 = int_to_ptr.vmem [resolvable:$true] %s925
      %931 = dma.vmem_to_hbm [thread:$0]  %s926, 4096, %s2, [#allocation3], 512, 512, 32
    $region13: #{tpu_custom_call.1} parent=1 // pred_fallthru
      _
    // Predicated region
    $region14: #{tpu_custom_call.1} parent=1 // pred_check
      _
    $region15: #{tpu_custom_call.1} parent=1 // pred_check_branch
      %933 = sbr.rel (0) target = $region17
    $region16: #{tpu_custom_call.1} parent=1 // pred_region
      %934 = dma.done [#allocation3], 4096
    $region17: #{tpu_custom_call.1} parent=1 // pred_fallthru
      _
    %935 = vsyncpa [#allocation3], 1

</llo_original>
